<compile_context>
chip_gen: v5e
topology: v5e:2x2
jax: 0.10.0
libtpu: 0.0.40
codegen_flags: <defaults>
</compile_context>

<pallas_src>
import math

import jax
import jax.numpy as jnp
import numpy as np
from jax.experimental import pallas as pl
from jax.experimental.pallas import tpu as pltpu

HIDDEN = 32                      # hidden_size -> 4*H = 128 (one full lane tile)


def pedal_kernel(x_ref, whh_ref, params_ref, y_ref):
    T, B = x_ref.shape
    H = whh_ref.shape[0]
    G = 4 * H

    x = x_ref[...]                                   # (T, B) f32
    whh = whh_ref[...]                               # (H, 4H) = W_hh^T

    # Packed parameters (one operand, one DMA).
    wih = params_ref[0:1, :G]                        # (1, 4H)  W_ih row (input size 1)
    b = params_ref[1:2, :G]                          # (1, 4H)  b_ih + b_hh
    wout = params_ref[2:3, :H]                       # (1, H)   W_out row
    bout = params_ref[3:4, 0:1]                      # (1, 1)   b_out

    # ---- Hoisted input projection (no recurrence dependence), kept in vregs.
    # gates_pre[t] = x_t * W_ih^T + (b_ih + b_hh)   -> (T, B, 4H)
    gates_pre = x[:, :, None] * wih[None, :, :] + b[None, :, :]

    # ---- Sequential LSTM recurrence (hidden=None -> zero h0/c0) -------------
    h = jnp.zeros((B, H), jnp.float32)
    c = jnp.zeros((B, H), jnp.float32)
    hs = []
    for t in range(T):
        # Only real per-step MXU work: h_{t-1} @ W_hh^T  (B,H) x (H,4H).
        gates = gates_pre[t] + jnp.dot(h, whh, preferred_element_type=jnp.float32)

        # Sigmoid via tanh identity: single native EUP op on the serial chain.
        sg = 0.5 * (jnp.tanh(0.5 * gates) + 1.0)      # (B, 4H) -> i, f, o
        g = jnp.tanh(gates[:, 2 * H:3 * H])           # candidate gate slice only
        i = sg[:, 0 * H:1 * H]                        # PyTorch gate order i,f,g,o
        f = sg[:, 1 * H:2 * H]
        o = sg[:, 3 * H:4 * H]

        c = f * c + i * g
        h = o * jnp.tanh(c)
        hs.append(h)                                  # stays in vregs

    # ---- Deferred output projection + residual, single write-back -----------
    # last_layer has out_features=1: elementwise mul + lane reduction, no MXU.
    h_all = jnp.stack(hs, axis=0)                               # (T, B, H)
    y = jnp.sum(h_all * wout[None, :, :], axis=-1)              # (T, B)
    y_ref[...] = y + bout + x                                    # + b_out + residual


def pedal_forward(x, w_ih, w_hh, b_ih, b_hh, w_out, b_out):
    """x: (T, B, 1) f32 (time-major, like nn.LSTM default).  Weights in
       PyTorch conventions: w_ih (4H, 1), w_hh (4H, H), b_ih (4H,), b_hh (4H,),
       w_out (1, H), b_out (1,)."""
    T, B, _ = x.shape
    H = w_hh.shape[1]
    G = 4 * H
    P = max(G, 128)                                   # packed-param row width

    x2d = jnp.asarray(x, jnp.float32).reshape(T, B)   # squeeze input dim 1
    whh_t = jnp.asarray(w_hh, jnp.float32).T          # (H, 4H)

    # Pack all tiny parameters into one (4, P) operand.
    params = jnp.zeros((4, P), jnp.float32)
    params = params.at[0, :G].set(jnp.asarray(w_ih, jnp.float32).reshape(G))
    params = params.at[1, :G].set(
        (jnp.asarray(b_ih, jnp.float32) + jnp.asarray(b_hh, jnp.float32)).reshape(G))
    params = params.at[2, :H].set(jnp.asarray(w_out, jnp.float32).reshape(H))
    params = params.at[3, 0].set(jnp.asarray(b_out, jnp.float32).reshape(()))

    y2d = pl.pallas_call(
        pedal_kernel,
        out_shape=jax.ShapeDtypeStruct((T, B), jnp.float32),
        in_specs=[
            pl.BlockSpec(memory_space=pltpu.MemorySpace.VMEM),   # x (whole array)
            pl.BlockSpec(memory_space=pltpu.MemorySpace.VMEM),   # W_hh^T
            pl.BlockSpec(memory_space=pltpu.MemorySpace.VMEM),   # packed params
        ],
        out_specs=pl.BlockSpec(memory_space=pltpu.MemorySpace.VMEM),
    )(x2d, whh_t, params)

    return y2d[:, :, None]                             # back to (T, B, 1)


def pedal_reference(x, w_ih, w_hh, b_ih, b_hh, w_out, b_out):
    """Pure-JAX reference of the PyTorch forward (LSTM + Linear + residual)."""
    H = w_hh.shape[1]
    T, B, _ = x.shape

    def step(carry, x_t):
        h, c = carry
        gates = x_t @ w_ih.T + h @ w_hh.T + b_ih + b_hh
        i = jax.nn.sigmoid(gates[:, 0 * H:1 * H])
        f = jax.nn.sigmoid(gates[:, 1 * H:2 * H])
        g = jnp.tanh(gates[:, 2 * H:3 * H])
        o = jax.nn.sigmoid(gates[:, 3 * H:4 * H])
        c = f * c + i * g
        h = o * jnp.tanh(c)
        y = h @ w_out.T + b_out + x_t
        return (h, c), y

    init = (jnp.zeros((B, H), jnp.float32), jnp.zeros((B, H), jnp.float32))
    _, ys = jax.lax.scan(step, init, x)
    return ys


if __name__ == "__main__":
    T, B, H = 8, 2, HIDDEN
    key = jax.random.PRNGKey(0)
    kx, k1, k2, k3, k4, k5, k6 = jax.random.split(key, 7)

    scale = 1.0 / math.sqrt(H)     # PyTorch LSTM / Linear default uniform init
    w_ih = jax.random.uniform(k1, (4 * H, 1), jnp.float32, -scale, scale)
    w_hh = jax.random.uniform(k2, (4 * H, H), jnp.float32, -scale, scale)
    b_ih = jax.random.uniform(k3, (4 * H,), jnp.float32, -scale, scale)
    b_hh = jax.random.uniform(k4, (4 * H,), jnp.float32, -scale, scale)
    w_out = jax.random.uniform(k5, (1, H), jnp.float32, -scale, scale)
    b_out = jax.random.uniform(k6, (1,), jnp.float32, -scale, scale)

    x = jax.random.normal(kx, (T, B, 1), jnp.float32)

    y = pedal_forward(x, w_ih, w_hh, b_ih, b_hh, w_out, b_out)
    y = jax.block_until_ready(y)

    y_ref = pedal_reference(x, w_ih, w_hh, b_ih, b_hh, w_out, b_out)
    np.testing.assert_allclose(np.asarray(y), np.asarray(y_ref),
                               rtol=1e-5, atol=1e-5)

    print("KERNEL_OK")
</pallas_src>

<mosaic_0001>
module attributes {stable_mosaic.version = 11 : i64} {
  func.func @pedal_kernel(%arg0: memref<8x2xf32, #tpu.memory_space<vmem>>, %arg1: memref<32x128xf32, #tpu.memory_space<vmem>>, %arg2: memref<4x128xf32, #tpu.memory_space<vmem>>, %arg3: memref<8x2xf32, #tpu.memory_space<vmem>>) attributes {dimension_semantics = [], scalar_prefetch = 0 : i64, scratch_operands = 0 : i64, tpu.core_type = #tpu.core_type<tc>} {
    %c0 = arith.constant 0 : index
    %c0_0 = arith.constant 0 : index
    %0 = vector.load %arg0[%c0, %c0_0] : memref<8x2xf32, #tpu.memory_space<vmem>>, vector<8x2xf32>
    %c0_1 = arith.constant 0 : index
    %c0_2 = arith.constant 0 : index
    %1 = vector.load %arg1[%c0_1, %c0_2] : memref<32x128xf32, #tpu.memory_space<vmem>>, vector<32x128xf32>
    %c0_3 = arith.constant 0 : index
    %c0_4 = arith.constant 0 : index
    %2 = vector.load %arg2[%c0_3, %c0_4] : memref<4x128xf32, #tpu.memory_space<vmem>>, vector<1x128xf32>
    %c1 = arith.constant 1 : index
    %c0_5 = arith.constant 0 : index
    %3 = vector.load %arg2[%c1, %c0_5] : memref<4x128xf32, #tpu.memory_space<vmem>>, vector<1x128xf32>
    %c2 = arith.constant 2 : index
    %c0_6 = arith.constant 0 : index
    %4 = vector.load %arg2[%c2, %c0_6] : memref<4x128xf32, #tpu.memory_space<vmem>>, vector<1x32xf32>
    %c3 = arith.constant 3 : index
    %c0_7 = arith.constant 0 : index
    %5 = vector.load %arg2[%c3, %c0_7] : memref<4x128xf32, #tpu.memory_space<vmem>>, vector<1x1xf32>
    %6 = vector.shape_cast %0 : vector<8x2xf32> to vector<8x2x1xf32>
    %7 = vector.shape_cast %2 : vector<1x128xf32> to vector<1x1x128xf32>
    %8 = vector.broadcast %6 : vector<8x2x1xf32> to vector<8x2x128xf32>
    %9 = vector.broadcast %7 : vector<1x1x128xf32> to vector<8x2x128xf32>
    %10 = arith.mulf %8, %9 : vector<8x2x128xf32>
    %11 = vector.shape_cast %3 : vector<1x128xf32> to vector<1x1x128xf32>
    %12 = vector.broadcast %11 : vector<1x1x128xf32> to vector<8x2x128xf32>
    %13 = arith.addf %10, %12 : vector<8x2x128xf32>
    %cst = arith.constant 0.000000e+00 : f32
    %14 = vector.broadcast %cst : f32 to vector<2x32xf32>
    %cst_8 = arith.constant 0.000000e+00 : f32
    %15 = vector.broadcast %cst_8 : f32 to vector<2x32xf32>
    %16 = vector.extract_strided_slice %13 {offsets = [0, 0, 0], sizes = [1, 2, 128], strides = [1, 1, 1]} : vector<8x2x128xf32> to vector<1x2x128xf32>
    %17 = vector.shape_cast %16 : vector<1x2x128xf32> to vector<2x128xf32>
    %cst_9 = arith.constant dense<0.000000e+00> : vector<2x128xf32>
    %18 = tpu.matmul %14, %1, %cst_9 {dimension_numbers = #tpu.dot_dimension_numbers<[1], [0], [0], [1], [0, 0, 1, 1], [], []>} : vector<2x32xf32>, vector<32x128xf32>, vector<2x128xf32> -> vector<2x128xf32>
    %19 = arith.addf %17, %18 : vector<2x128xf32>
    %cst_10 = arith.constant 5.000000e-01 : f32
    %20 = vector.broadcast %cst_10 : f32 to vector<2x128xf32>
    %21 = arith.mulf %20, %19 : vector<2x128xf32>
    %22 = math.tanh %21 : vector<2x128xf32>
    %cst_11 = arith.constant 1.000000e+00 : f32
    %23 = vector.broadcast %cst_11 : f32 to vector<2x128xf32>
    %24 = arith.addf %22, %23 : vector<2x128xf32>
    %cst_12 = arith.constant 5.000000e-01 : f32
    %25 = vector.broadcast %cst_12 : f32 to vector<2x128xf32>
    %26 = arith.mulf %25, %24 : vector<2x128xf32>
    %27 = vector.extract_strided_slice %19 {offsets = [0, 64], sizes = [2, 32], strides = [1, 1]} : vector<2x128xf32> to vector<2x32xf32>
    %28 = math.tanh %27 : vector<2x32xf32>
    %29 = vector.extract_strided_slice %26 {offsets = [0, 0], sizes = [2, 32], strides = [1, 1]} : vector<2x128xf32> to vector<2x32xf32>
    %30 = vector.extract_strided_slice %26 {offsets = [0, 32], sizes = [2, 32], strides = [1, 1]} : vector<2x128xf32> to vector<2x32xf32>
    %31 = vector.extract_strided_slice %26 {offsets = [0, 96], sizes = [2, 32], strides = [1, 1]} : vector<2x128xf32> to vector<2x32xf32>
    %32 = arith.mulf %30, %15 : vector<2x32xf32>
    %33 = arith.mulf %29, %28 : vector<2x32xf32>
    %34 = arith.addf %32, %33 : vector<2x32xf32>
    %35 = math.tanh %34 : vector<2x32xf32>
    %36 = arith.mulf %31, %35 : vector<2x32xf32>
    %37 = vector.extract_strided_slice %13 {offsets = [1, 0, 0], sizes = [1, 2, 128], strides = [1, 1, 1]} : vector<8x2x128xf32> to vector<1x2x128xf32>
    %38 = vector.shape_cast %37 : vector<1x2x128xf32> to vector<2x128xf32>
    %cst_13 = arith.constant dense<0.000000e+00> : vector<2x128xf32>
    %39 = tpu.matmul %36, %1, %cst_13 {dimension_numbers = #tpu.dot_dimension_numbers<[1], [0], [0], [1], [0, 0, 1, 1], [], []>} : vector<2x32xf32>, vector<32x128xf32>, vector<2x128xf32> -> vector<2x128xf32>
    %40 = arith.addf %38, %39 : vector<2x128xf32>
    %cst_14 = arith.constant 5.000000e-01 : f32
    %41 = vector.broadcast %cst_14 : f32 to vector<2x128xf32>
    %42 = arith.mulf %41, %40 : vector<2x128xf32>
    %43 = math.tanh %42 : vector<2x128xf32>
    %cst_15 = arith.constant 1.000000e+00 : f32
    %44 = vector.broadcast %cst_15 : f32 to vector<2x128xf32>
    %45 = arith.addf %43, %44 : vector<2x128xf32>
    %cst_16 = arith.constant 5.000000e-01 : f32
    %46 = vector.broadcast %cst_16 : f32 to vector<2x128xf32>
    %47 = arith.mulf %46, %45 : vector<2x128xf32>
    %48 = vector.extract_strided_slice %40 {offsets = [0, 64], sizes = [2, 32], strides = [1, 1]} : vector<2x128xf32> to vector<2x32xf32>
    %49 = math.tanh %48 : vector<2x32xf32>
    %50 = vector.extract_strided_slice %47 {offsets = [0, 0], sizes = [2, 32], strides = [1, 1]} : vector<2x128xf32> to vector<2x32xf32>
    %51 = vector.extract_strided_slice %47 {offsets = [0, 32], sizes = [2, 32], strides = [1, 1]} : vector<2x128xf32> to vector<2x32xf32>
    %52 = vector.extract_strided_slice %47 {offsets = [0, 96], sizes = [2, 32], strides = [1, 1]} : vector<2x128xf32> to vector<2x32xf32>
    %53 = arith.mulf %51, %34 : vector<2x32xf32>
    %54 = arith.mulf %50, %49 : vector<2x32xf32>
    %55 = arith.addf %53, %54 : vector<2x32xf32>
    %56 = math.tanh %55 : vector<2x32xf32>
    %57 = arith.mulf %52, %56 : vector<2x32xf32>
    %58 = vector.extract_strided_slice %13 {offsets = [2, 0, 0], sizes = [1, 2, 128], strides = [1, 1, 1]} : vector<8x2x128xf32> to vector<1x2x128xf32>
    %59 = vector.shape_cast %58 : vector<1x2x128xf32> to vector<2x128xf32>
    %cst_17 = arith.constant dense<0.000000e+00> : vector<2x128xf32>
    %60 = tpu.matmul %57, %1, %cst_17 {dimension_numbers = #tpu.dot_dimension_numbers<[1], [0], [0], [1], [0, 0, 1, 1], [], []>} : vector<2x32xf32>, vector<32x128xf32>, vector<2x128xf32> -> vector<2x128xf32>
    %61 = arith.addf %59, %60 : vector<2x128xf32>
    %cst_18 = arith.constant 5.000000e-01 : f32
    %62 = vector.broadcast %cst_18 : f32 to vector<2x128xf32>
    %63 = arith.mulf %62, %61 : vector<2x128xf32>
    %64 = math.tanh %63 : vector<2x128xf32>
    %cst_19 = arith.constant 1.000000e+00 : f32
    %65 = vector.broadcast %cst_19 : f32 to vector<2x128xf32>
    %66 = arith.addf %64, %65 : vector<2x128xf32>
    %cst_20 = arith.constant 5.000000e-01 : f32
    %67 = vector.broadcast %cst_20 : f32 to vector<2x128xf32>
    %68 = arith.mulf %67, %66 : vector<2x128xf32>
    %69 = vector.extract_strided_slice %61 {offsets = [0, 64], sizes = [2, 32], strides = [1, 1]} : vector<2x128xf32> to vector<2x32xf32>
    %70 = math.tanh %69 : vector<2x32xf32>
    %71 = vector.extract_strided_slice %68 {offsets = [0, 0], sizes = [2, 32], strides = [1, 1]} : vector<2x128xf32> to vector<2x32xf32>
    %72 = vector.extract_strided_slice %68 {offsets = [0, 32], sizes = [2, 32], strides = [1, 1]} : vector<2x128xf32> to vector<2x32xf32>
    %73 = vector.extract_strided_slice %68 {offsets = [0, 96], sizes = [2, 32], strides = [1, 1]} : vector<2x128xf32> to vector<2x32xf32>
    %74 = arith.mulf %72, %55 : vector<2x32xf32>
    %75 = arith.mulf %71, %70 : vector<2x32xf32>
    %76 = arith.addf %74, %75 : vector<2x32xf32>
    %77 = math.tanh %76 : vector<2x32xf32>
    %78 = arith.mulf %73, %77 : vector<2x32xf32>
    %79 = vector.extract_strided_slice %13 {offsets = [3, 0, 0], sizes = [1, 2, 128], strides = [1, 1, 1]} : vector<8x2x128xf32> to vector<1x2x128xf32>
    %80 = vector.shape_cast %79 : vector<1x2x128xf32> to vector<2x128xf32>
    %cst_21 = arith.constant dense<0.000000e+00> : vector<2x128xf32>
    %81 = tpu.matmul %78, %1, %cst_21 {dimension_numbers = #tpu.dot_dimension_numbers<[1], [0], [0], [1], [0, 0, 1, 1], [], []>} : vector<2x32xf32>, vector<32x128xf32>, vector<2x128xf32> -> vector<2x128xf32>
    %82 = arith.addf %80, %81 : vector<2x128xf32>
    %cst_22 = arith.constant 5.000000e-01 : f32
    %83 = vector.broadcast %cst_22 : f32 to vector<2x128xf32>
    %84 = arith.mulf %83, %82 : vector<2x128xf32>
    %85 = math.tanh %84 : vector<2x128xf32>
    %cst_23 = arith.constant 1.000000e+00 : f32
    %86 = vector.broadcast %cst_23 : f32 to vector<2x128xf32>
    %87 = arith.addf %85, %86 : vector<2x128xf32>
    %cst_24 = arith.constant 5.000000e-01 : f32
    %88 = vector.broadcast %cst_24 : f32 to vector<2x128xf32>
    %89 = arith.mulf %88, %87 : vector<2x128xf32>
    %90 = vector.extract_strided_slice %82 {offsets = [0, 64], sizes = [2, 32], strides = [1, 1]} : vector<2x128xf32> to vector<2x32xf32>
    %91 = math.tanh %90 : vector<2x32xf32>
    %92 = vector.extract_strided_slice %89 {offsets = [0, 0], sizes = [2, 32], strides = [1, 1]} : vector<2x128xf32> to vector<2x32xf32>
    %93 = vector.extract_strided_slice %89 {offsets = [0, 32], sizes = [2, 32], strides = [1, 1]} : vector<2x128xf32> to vector<2x32xf32>
    %94 = vector.extract_strided_slice %89 {offsets = [0, 96], sizes = [2, 32], strides = [1, 1]} : vector<2x128xf32> to vector<2x32xf32>
    %95 = arith.mulf %93, %76 : vector<2x32xf32>
    %96 = arith.mulf %92, %91 : vector<2x32xf32>
    %97 = arith.addf %95, %96 : vector<2x32xf32>
    %98 = math.tanh %97 : vector<2x32xf32>
    %99 = arith.mulf %94, %98 : vector<2x32xf32>
    %100 = vector.extract_strided_slice %13 {offsets = [4, 0, 0], sizes = [1, 2, 128], strides = [1, 1, 1]} : vector<8x2x128xf32> to vector<1x2x128xf32>
    %101 = vector.shape_cast %100 : vector<1x2x128xf32> to vector<2x128xf32>
    %cst_25 = arith.constant dense<0.000000e+00> : vector<2x128xf32>
    %102 = tpu.matmul %99, %1, %cst_25 {dimension_numbers = #tpu.dot_dimension_numbers<[1], [0], [0], [1], [0, 0, 1, 1], [], []>} : vector<2x32xf32>, vector<32x128xf32>, vector<2x128xf32> -> vector<2x128xf32>
    %103 = arith.addf %101, %102 : vector<2x128xf32>
    %cst_26 = arith.constant 5.000000e-01 : f32
    %104 = vector.broadcast %cst_26 : f32 to vector<2x128xf32>
    %105 = arith.mulf %104, %103 : vector<2x128xf32>
    %106 = math.tanh %105 : vector<2x128xf32>
    %cst_27 = arith.constant 1.000000e+00 : f32
    %107 = vector.broadcast %cst_27 : f32 to vector<2x128xf32>
    %108 = arith.addf %106, %107 : vector<2x128xf32>
    %cst_28 = arith.constant 5.000000e-01 : f32
    %109 = vector.broadcast %cst_28 : f32 to vector<2x128xf32>
    %110 = arith.mulf %109, %108 : vector<2x128xf32>
    %111 = vector.extract_strided_slice %103 {offsets = [0, 64], sizes = [2, 32], strides = [1, 1]} : vector<2x128xf32> to vector<2x32xf32>
    %112 = math.tanh %111 : vector<2x32xf32>
    %113 = vector.extract_strided_slice %110 {offsets = [0, 0], sizes = [2, 32], strides = [1, 1]} : vector<2x128xf32> to vector<2x32xf32>
    %114 = vector.extract_strided_slice %110 {offsets = [0, 32], sizes = [2, 32], strides = [1, 1]} : vector<2x128xf32> to vector<2x32xf32>
    %115 = vector.extract_strided_slice %110 {offsets = [0, 96], sizes = [2, 32], strides = [1, 1]} : vector<2x128xf32> to vector<2x32xf32>
    %116 = arith.mulf %114, %97 : vector<2x32xf32>
    %117 = arith.mulf %113, %112 : vector<2x32xf32>
    %118 = arith.addf %116, %117 : vector<2x32xf32>
    %119 = math.tanh %118 : vector<2x32xf32>
    %120 = arith.mulf %115, %119 : vector<2x32xf32>
    %121 = vector.extract_strided_slice %13 {offsets = [5, 0, 0], sizes = [1, 2, 128], strides = [1, 1, 1]} : vector<8x2x128xf32> to vector<1x2x128xf32>
    %122 = vector.shape_cast %121 : vector<1x2x128xf32> to vector<2x128xf32>
    %cst_29 = arith.constant dense<0.000000e+00> : vector<2x128xf32>
    %123 = tpu.matmul %120, %1, %cst_29 {dimension_numbers = #tpu.dot_dimension_numbers<[1], [0], [0], [1], [0, 0, 1, 1], [], []>} : vector<2x32xf32>, vector<32x128xf32>, vector<2x128xf32> -> vector<2x128xf32>
    %124 = arith.addf %122, %123 : vector<2x128xf32>
    %cst_30 = arith.constant 5.000000e-01 : f32
    %125 = vector.broadcast %cst_30 : f32 to vector<2x128xf32>
    %126 = arith.mulf %125, %124 : vector<2x128xf32>
    %127 = math.tanh %126 : vector<2x128xf32>
    %cst_31 = arith.constant 1.000000e+00 : f32
    %128 = vector.broadcast %cst_31 : f32 to vector<2x128xf32>
    %129 = arith.addf %127, %128 : vector<2x128xf32>
    %cst_32 = arith.constant 5.000000e-01 : f32
    %130 = vector.broadcast %cst_32 : f32 to vector<2x128xf32>
    %131 = arith.mulf %130, %129 : vector<2x128xf32>
    %132 = vector.extract_strided_slice %124 {offsets = [0, 64], sizes = [2, 32], strides = [1, 1]} : vector<2x128xf32> to vector<2x32xf32>
    %133 = math.tanh %132 : vector<2x32xf32>
    %134 = vector.extract_strided_slice %131 {offsets = [0, 0], sizes = [2, 32], strides = [1, 1]} : vector<2x128xf32> to vector<2x32xf32>
    %135 = vector.extract_strided_slice %131 {offsets = [0, 32], sizes = [2, 32], strides = [1, 1]} : vector<2x128xf32> to vector<2x32xf32>
    %136 = vector.extract_strided_slice %131 {offsets = [0, 96], sizes = [2, 32], strides = [1, 1]} : vector<2x128xf32> to vector<2x32xf32>
    %137 = arith.mulf %135, %118 : vector<2x32xf32>
    %138 = arith.mulf %134, %133 : vector<2x32xf32>
    %139 = arith.addf %137, %138 : vector<2x32xf32>
    %140 = math.tanh %139 : vector<2x32xf32>
    %141 = arith.mulf %136, %140 : vector<2x32xf32>
    %142 = vector.extract_strided_slice %13 {offsets = [6, 0, 0], sizes = [1, 2, 128], strides = [1, 1, 1]} : vector<8x2x128xf32> to vector<1x2x128xf32>
    %143 = vector.shape_cast %142 : vector<1x2x128xf32> to vector<2x128xf32>
    %cst_33 = arith.constant dense<0.000000e+00> : vector<2x128xf32>
    %144 = tpu.matmul %141, %1, %cst_33 {dimension_numbers = #tpu.dot_dimension_numbers<[1], [0], [0], [1], [0, 0, 1, 1], [], []>} : vector<2x32xf32>, vector<32x128xf32>, vector<2x128xf32> -> vector<2x128xf32>
    %145 = arith.addf %143, %144 : vector<2x128xf32>
    %cst_34 = arith.constant 5.000000e-01 : f32
    %146 = vector.broadcast %cst_34 : f32 to vector<2x128xf32>
    %147 = arith.mulf %146, %145 : vector<2x128xf32>
    %148 = math.tanh %147 : vector<2x128xf32>
    %cst_35 = arith.constant 1.000000e+00 : f32
    %149 = vector.broadcast %cst_35 : f32 to vector<2x128xf32>
    %150 = arith.addf %148, %149 : vector<2x128xf32>
    %cst_36 = arith.constant 5.000000e-01 : f32
    %151 = vector.broadcast %cst_36 : f32 to vector<2x128xf32>
    %152 = arith.mulf %151, %150 : vector<2x128xf32>
    %153 = vector.extract_strided_slice %145 {offsets = [0, 64], sizes = [2, 32], strides = [1, 1]} : vector<2x128xf32> to vector<2x32xf32>
    %154 = math.tanh %153 : vector<2x32xf32>
    %155 = vector.extract_strided_slice %152 {offsets = [0, 0], sizes = [2, 32], strides = [1, 1]} : vector<2x128xf32> to vector<2x32xf32>
    %156 = vector.extract_strided_slice %152 {offsets = [0, 32], sizes = [2, 32], strides = [1, 1]} : vector<2x128xf32> to vector<2x32xf32>
    %157 = vector.extract_strided_slice %152 {offsets = [0, 96], sizes = [2, 32], strides = [1, 1]} : vector<2x128xf32> to vector<2x32xf32>
    %158 = arith.mulf %156, %139 : vector<2x32xf32>
    %159 = arith.mulf %155, %154 : vector<2x32xf32>
    %160 = arith.addf %158, %159 : vector<2x32xf32>
    %161 = math.tanh %160 : vector<2x32xf32>
    %162 = arith.mulf %157, %161 : vector<2x32xf32>
    %163 = vector.extract_strided_slice %13 {offsets = [7, 0, 0], sizes = [1, 2, 128], strides = [1, 1, 1]} : vector<8x2x128xf32> to vector<1x2x128xf32>
    %164 = vector.shape_cast %163 : vector<1x2x128xf32> to vector<2x128xf32>
    %cst_37 = arith.constant dense<0.000000e+00> : vector<2x128xf32>
    %165 = tpu.matmul %162, %1, %cst_37 {dimension_numbers = #tpu.dot_dimension_numbers<[1], [0], [0], [1], [0, 0, 1, 1], [], []>} : vector<2x32xf32>, vector<32x128xf32>, vector<2x128xf32> -> vector<2x128xf32>
    %166 = arith.addf %164, %165 : vector<2x128xf32>
    %cst_38 = arith.constant 5.000000e-01 : f32
    %167 = vector.broadcast %cst_38 : f32 to vector<2x128xf32>
    %168 = arith.mulf %167, %166 : vector<2x128xf32>
    %169 = math.tanh %168 : vector<2x128xf32>
    %cst_39 = arith.constant 1.000000e+00 : f32
    %170 = vector.broadcast %cst_39 : f32 to vector<2x128xf32>
    %171 = arith.addf %169, %170 : vector<2x128xf32>
    %cst_40 = arith.constant 5.000000e-01 : f32
    %172 = vector.broadcast %cst_40 : f32 to vector<2x128xf32>
    %173 = arith.mulf %172, %171 : vector<2x128xf32>
    %174 = vector.extract_strided_slice %166 {offsets = [0, 64], sizes = [2, 32], strides = [1, 1]} : vector<2x128xf32> to vector<2x32xf32>
    %175 = math.tanh %174 : vector<2x32xf32>
    %176 = vector.extract_strided_slice %173 {offsets = [0, 0], sizes = [2, 32], strides = [1, 1]} : vector<2x128xf32> to vector<2x32xf32>
    %177 = vector.extract_strided_slice %173 {offsets = [0, 32], sizes = [2, 32], strides = [1, 1]} : vector<2x128xf32> to vector<2x32xf32>
    %178 = vector.extract_strided_slice %173 {offsets = [0, 96], sizes = [2, 32], strides = [1, 1]} : vector<2x128xf32> to vector<2x32xf32>
    %179 = arith.mulf %177, %160 : vector<2x32xf32>
    %180 = arith.mulf %176, %175 : vector<2x32xf32>
    %181 = arith.addf %179, %180 : vector<2x32xf32>
    %182 = math.tanh %181 : vector<2x32xf32>
    %183 = arith.mulf %178, %182 : vector<2x32xf32>
    %184 = vector.shape_cast %36 : vector<2x32xf32> to vector<1x2x32xf32>
    %185 = vector.shape_cast %57 : vector<2x32xf32> to vector<1x2x32xf32>
    %186 = vector.shape_cast %78 : vector<2x32xf32> to vector<1x2x32xf32>
    %187 = vector.shape_cast %99 : vector<2x32xf32> to vector<1x2x32xf32>
    %188 = vector.shape_cast %120 : vector<2x32xf32> to vector<1x2x32xf32>
    %189 = vector.shape_cast %141 : vector<2x32xf32> to vector<1x2x32xf32>
    %190 = vector.shape_cast %162 : vector<2x32xf32> to vector<1x2x32xf32>
    %191 = vector.shape_cast %183 : vector<2x32xf32> to vector<1x2x32xf32>
    %192 = tpu.concatenate %184, %185, %186, %187, %188, %189, %190, %191 in 0 : vector<1x2x32xf32>, vector<1x2x32xf32>, vector<1x2x32xf32>, vector<1x2x32xf32>, vector<1x2x32xf32>, vector<1x2x32xf32>, vector<1x2x32xf32>, vector<1x2x32xf32> -> vector<8x2x32xf32>
    %193 = vector.shape_cast %4 : vector<1x32xf32> to vector<1x1x32xf32>
    %194 = vector.broadcast %193 : vector<1x1x32xf32> to vector<8x2x32xf32>
    %195 = arith.mulf %192, %194 : vector<8x2x32xf32>
    %cst_41 = arith.constant dense<0.000000e+00> : vector<8x2xf32>
    %196 = vector.multi_reduction <add>, %195, %cst_41 [2] : vector<8x2x32xf32> to vector<8x2xf32>
    %197 = vector.broadcast %5 : vector<1x1xf32> to vector<8x2xf32>
    %198 = arith.addf %196, %197 : vector<8x2xf32>
    %199 = arith.addf %198, %0 : vector<8x2xf32>
    %c0_42 = arith.constant 0 : index
    %c0_43 = arith.constant 0 : index
    %200 = vector.load %arg3[%c0_42, %c0_43] : memref<8x2xf32, #tpu.memory_space<vmem>>, vector<8x2xf32>
    tpu.vector_store %arg3[%c0_42, %c0_43], %199 {strides = array<i32>} : memref<8x2xf32, #tpu.memory_space<vmem>>, vector<8x2xf32>,
    return
  }
}

</mosaic_0001>

<llo_original>
// kernel: tpu_custom_call.1
$region0: #{tpu_custom_call.1}
  #allocation0 [shape = 'u32[]', space=smem, size = 0x4, offset = 0x4, fixed_abs, tag = 'smem constant byte address 0x4 - core index']
  #allocation1 [shape = 'u32[72,128]{1,0:T(1,128)}', space=vmem, size = 0x9000, scoped, tag = 'internal scratch']
  %s0 = inlined_call_operand.vmem [shape: f32[8,2], index: 0, kind: input, shape index: {}]
  %s1 = inlined_call_operand.hbm [shape: f32[32,128], index: 1, kind: input, shape index: {}]
  %s2 = inlined_call_operand.vmem [shape: f32[4,128], index: 2, kind: input, shape index: {}]
  %s3 = inlined_call_operand.vmem [shape: f32[8,2], index: 3, kind: output, shape index: {}]
  %s4 = sld [smem:[#allocation0]]
  $region26: #{tpu_custom_call.1} parent=0
    _
  %s6 = ssub.s32 1, %s4
  %s7 = scalar_select 0, %s6, %s4
  $region1: #{tpu_custom_call.1} parent=0
    #allocation2 [shape = 'u8[16384]{0}', space=vmem, size = 0x4000, scoped, tag = 'input window, operand 1, single buffered']
    #allocation3 [shape = 's32[1]{0}', space=sflag, size = 0x4, scoped, tag = 'scoped memory for tpu_custom_call.1']
    %8 = vsyncpa [#allocation3], 0
    // Predicated region
    $region2: #{tpu_custom_call.1} parent=1 // pred_check
      _
    $region3: #{tpu_custom_call.1} parent=1 // pred_check_branch
      %10 = sbr.rel (0) target = $region5
    $region4: #{tpu_custom_call.1} parent=1 // pred_region
      _
    $region5: #{tpu_custom_call.1} parent=1 // pred_fallthru
      _
    // Predicated region
    $region6: #{tpu_custom_call.1} parent=1 // pred_check
      _
    $region7: #{tpu_custom_call.1} parent=1 // pred_check_branch
      %12 = sbr.rel (0) target = $region9
    $region8: #{tpu_custom_call.1} parent=1 // pred_region
      %14 = vsyncadd [#allocation3], 0
      %s15 = sshll.u32 %s1, 4
      %s16 = int_to_ptr.hbm [resolvable:$true] %s15
      %s17 = sshll.u32 [#allocation2], 4
      %s18 = int_to_ptr.vmem [resolvable:$true] %s17
      %23 = dma.hbm_to_vmem [thread:$0]  %s16, 512, %s18, [#allocation3], 128, 128, 8
    $region9: #{tpu_custom_call.1} parent=1 // pred_fallthru
      _
    // Predicated region
    $region10: #{tpu_custom_call.1} parent=1 // pred_check
      _
    $region11: #{tpu_custom_call.1} parent=1 // pred_check_branch
      %25 = sbr.rel (0) target = $region13
    $region12: #{tpu_custom_call.1} parent=1 // pred_region
      _
    $region13: #{tpu_custom_call.1} parent=1 // pred_fallthru
      _
    // Predicated region
    $region14: #{tpu_custom_call.1} parent=1 // pred_check
      _
    $region15: #{tpu_custom_call.1} parent=1 // pred_check_branch
      %27 = sbr.rel (0) target = $region17
    $region16: #{tpu_custom_call.1} parent=1 // pred_region
      %29 = dma.done [#allocation3], 512
    $region17: #{tpu_custom_call.1} parent=1 // pred_fallthru
      _
    %v30 = vld [vmem:[%s0] sm:$0xff]
    %v31 = vld [vmem:[#allocation2] sm:$0xff]
    %v32 = vld [vmem:[#allocation2 + $0x8] sm:$0xff]
    %v33 = vld [vmem:[#allocation2 + $0x10] sm:$0xff]
    %v34 = vld [vmem:[#allocation2 + $0x18] sm:$0xff]
    %v35 = vld [vmem:[%s2] sm:$0x1]
    %v36 = vld [vmem:[%s2 + $0x1] sm:$0x1]
    %v37 = vld [vmem:[%s2 + $0x2] sm:$0x1]
    %v38 = vld [vmem:[%s2 + $0x3] sm:$0x1]
    %v39 = vperm.slane %v30, 0
    %v40 = vlaneseq
    %v41 = vshrl.u32 %v40, 7
    %43 = vset.pattern.permute.xlu0 %v41
    %44 = vperm.xlu0 %43, %v39
    %v45 = vpop.permute.xlu0 %44
    %v46 = vperm.slane %v30, 1
    %v47 = vlaneseq
    %v48 = vshrl.u32 %v47, 7
    %50 = vset.pattern.permute.xlu0 %v48
    %51 = vperm.xlu0 %50, %v46
    %v52 = vpop.permute.xlu0 %51
    %v53 = vperm.slane %v30, 2
    %v54 = vlaneseq
    %v55 = vshrl.u32 %v54, 7
    %57 = vset.pattern.permute.xlu0 %v55
    %58 = vperm.xlu0 %57, %v53
    %v59 = vpop.permute.xlu0 %58
    %v60 = vperm.slane %v30, 3
    %v61 = vlaneseq
    %v62 = vshrl.u32 %v61, 7
    %64 = vset.pattern.permute.xlu0 %v62
    %65 = vperm.xlu0 %64, %v60
    %v66 = vpop.permute.xlu0 %65
    %v67 = vperm.slane %v30, 4
    %v68 = vlaneseq
    %v69 = vshrl.u32 %v68, 7
    %71 = vset.pattern.permute.xlu0 %v69
    %72 = vperm.xlu0 %71, %v67
    %v73 = vpop.permute.xlu0 %72
    %v74 = vperm.slane %v30, 5
    %v75 = vlaneseq
    %v76 = vshrl.u32 %v75, 7
    %78 = vset.pattern.permute.xlu0 %v76
    %79 = vperm.xlu0 %78, %v74
    %v80 = vpop.permute.xlu0 %79
    %v81 = vperm.slane %v30, 6
    %v82 = vlaneseq
    %v83 = vshrl.u32 %v82, 7
    %85 = vset.pattern.permute.xlu0 %v83
    %86 = vperm.xlu0 %85, %v81
    %v87 = vpop.permute.xlu0 %86
    %v88 = vperm.slane %v30, 7
    %v89 = vlaneseq
    %v90 = vshrl.u32 %v89, 7
    %92 = vset.pattern.permute.xlu0 %v90
    %93 = vperm.xlu0 %92, %v88
    %v94 = vpop.permute.xlu0 %93
    %v95 = vperm.slane %v35, 0
    %v96 = vmul.f32 %v45, %v95
    %v97 = vmul.f32 %v52, %v95
    %v98 = vmul.f32 %v59, %v95
    %v99 = vmul.f32 %v66, %v95
    %v100 = vmul.f32 %v73, %v95
    %v101 = vmul.f32 %v80, %v95
    %v102 = vmul.f32 %v87, %v95
    %v103 = vmul.f32 %v94, %v95
    %v104 = vperm.slane %v36, 0
    %v105 = vadd.f32 %v96, %v104
    %v106 = vadd.f32 %v97, %v104
    %v107 = vadd.f32 %v98, %v104
    %v108 = vadd.f32 %v99, %v104
    %v109 = vadd.f32 %v100, %v104
    %v110 = vadd.f32 %v101, %v104
    %v111 = vadd.f32 %v102, %v104
    %v112 = vadd.f32 %v103, %v104
    %vm113 = vcmask 261120
    %v115 = vsel %vm113, 0.0, 0
    %117 = vmatpush.msra.mxu0 0.0
    %118 = vmatpush.msra.mxu0 0.0
    %119 = vmatpush.msra.mxu0 0.0
    %120 = vmatpush.msra.mxu0 0.0
    %121 = vmatpush.msra.mxu0 0.0
    %122 = vmatpush.msra.mxu0 0.0
    %123 = vmatpush.msra.mxu0 0.0
    %124 = vmatpush.msra.mxu0 0.0
    %125 = vmatpush.msra.mxu0 0.0
    %126 = vmatpush.msra.mxu0 0.0
    %127 = vmatpush.msra.mxu0 0.0
    %128 = vmatpush.msra.mxu0 0.0
    %129 = vmatpush.msra.mxu0 %v34
    %130 = vmatpush.msra.mxu0 %v33
    %131 = vmatpush.msra.mxu0 %v32
    %132 = vmatpush.msra.mxu0 %v31
    %133 = vmatmul.f32.gmra.mxu0 %v115
    %v134 = vpop.f32.mrf.mxu0
    %v135 = vadd.f32 0.0, %v134
    %136 = vdwg.mxu0
    %v137 = vadd.f32 %v105, %v135
    %v138 = vmul.f32 %v137, 0.5
    %v139 = vtanh.pop %v138
    %v140 = vadd.f32 %v139, 1.0
    %v141 = vmul.f32 %v140, 0.5
    %v142 = vtanh.pop %v137
    %v143 = vmul.f32 %v141, 0.0
    %145 = vrot.lane.b32.xlu0 %v142, 64
    %v146 = vpop.permute.xlu0 %145
    %v148 = vmul.f32 %v141, %v146
    %150 = vrot.lane.b32.xlu0 %v148, 32
    %v151 = vpop.permute.xlu0 %150
    %v153 = vadd.f32 %v143, %v151
    %v154 = vtanh.pop %v153
    %156 = vrot.lane.b32.xlu0 %v154, 64
    %v157 = vpop.permute.xlu0 %156
    %v159 = vmul.f32 %v141, %v157
    %161 = vrot.lane.b32.xlu0 %v159, 32
    %v162 = vpop.permute.xlu0 %161
    %v163 = vsel %vm113, %v162, 0
    %165 = vmatpush.msra.mxu0 0.0
    %166 = vmatpush.msra.mxu0 0.0
    %167 = vmatpush.msra.mxu0 0.0
    %168 = vmatpush.msra.mxu0 0.0
    %169 = vmatpush.msra.mxu0 0.0
    %170 = vmatpush.msra.mxu0 0.0
    %171 = vmatpush.msra.mxu0 0.0
    %172 = vmatpush.msra.mxu0 0.0
    %173 = vmatpush.msra.mxu0 0.0
    %174 = vmatpush.msra.mxu0 0.0
    %175 = vmatpush.msra.mxu0 0.0
    %176 = vmatpush.msra.mxu0 0.0
    %177 = vmatpush.msra.mxu0 %v34
    %178 = vmatpush.msra.mxu0 %v33
    %179 = vmatpush.msra.mxu0 %v32
    %180 = vmatpush.msra.mxu0 %v31
    %181 = vmatmul.f32.gmra.mxu0 %v163
    %v182 = vpop.f32.mrf.mxu0
    %v183 = vadd.f32 0.0, %v182
    %184 = vdwg.mxu0
    %v185 = vadd.f32 %v106, %v183
    %v186 = vmul.f32 %v185, 0.5
    %v187 = vtanh.pop %v186
    %v188 = vadd.f32 %v187, 1.0
    %v189 = vmul.f32 %v188, 0.5
    %v190 = vtanh.pop %v185
    %v191 = vmul.f32 %v189, %v153
    %193 = vrot.lane.b32.xlu0 %v190, 64
    %v194 = vpop.permute.xlu0 %193
    %v196 = vmul.f32 %v189, %v194
    %198 = vrot.lane.b32.xlu0 %v196, 32
    %v199 = vpop.permute.xlu0 %198
    %v201 = vadd.f32 %v191, %v199
    %v202 = vtanh.pop %v201
    %204 = vrot.lane.b32.xlu0 %v202, 64
    %v205 = vpop.permute.xlu0 %204
    %v207 = vmul.f32 %v189, %v205
    %209 = vrot.lane.b32.xlu0 %v207, 32
    %v210 = vpop.permute.xlu0 %209
    %v211 = vsel %vm113, %v210, 0
    %213 = vmatpush.msra.mxu0 0.0
    %214 = vmatpush.msra.mxu0 0.0
    %215 = vmatpush.msra.mxu0 0.0
    %216 = vmatpush.msra.mxu0 0.0
    %217 = vmatpush.msra.mxu0 0.0
    %218 = vmatpush.msra.mxu0 0.0
    %219 = vmatpush.msra.mxu0 0.0
    %220 = vmatpush.msra.mxu0 0.0
    %221 = vmatpush.msra.mxu0 0.0
    %222 = vmatpush.msra.mxu0 0.0
    %223 = vmatpush.msra.mxu0 0.0
    %224 = vmatpush.msra.mxu0 0.0
    %225 = vmatpush.msra.mxu0 %v34
    %226 = vmatpush.msra.mxu0 %v33
    %227 = vmatpush.msra.mxu0 %v32
    %228 = vmatpush.msra.mxu0 %v31
    %229 = vmatmul.f32.gmra.mxu0 %v211
    %v230 = vpop.f32.mrf.mxu0
    %v231 = vadd.f32 0.0, %v230
    %232 = vdwg.mxu0
    %v233 = vadd.f32 %v107, %v231
    %v234 = vmul.f32 %v233, 0.5
    %v235 = vtanh.pop %v234
    %v236 = vadd.f32 %v235, 1.0
    %v237 = vmul.f32 %v236, 0.5
    %v238 = vtanh.pop %v233
    %v239 = vmul.f32 %v237, %v201
    %241 = vrot.lane.b32.xlu0 %v238, 64
    %v242 = vpop.permute.xlu0 %241
    %v244 = vmul.f32 %v237, %v242
    %246 = vrot.lane.b32.xlu0 %v244, 32
    %v247 = vpop.permute.xlu0 %246
    %v249 = vadd.f32 %v239, %v247
    %v250 = vtanh.pop %v249
    %252 = vrot.lane.b32.xlu0 %v250, 64
    %v253 = vpop.permute.xlu0 %252
    %v255 = vmul.f32 %v237, %v253
    %257 = vrot.lane.b32.xlu0 %v255, 32
    %v258 = vpop.permute.xlu0 %257
    %v259 = vsel %vm113, %v258, 0
    %261 = vmatpush.msra.mxu0 0.0
    %262 = vmatpush.msra.mxu0 0.0
    %263 = vmatpush.msra.mxu0 0.0
    %264 = vmatpush.msra.mxu0 0.0
    %265 = vmatpush.msra.mxu0 0.0
    %266 = vmatpush.msra.mxu0 0.0
    %267 = vmatpush.msra.mxu0 0.0
    %268 = vmatpush.msra.mxu0 0.0
    %269 = vmatpush.msra.mxu0 0.0
    %270 = vmatpush.msra.mxu0 0.0
    %271 = vmatpush.msra.mxu0 0.0
    %272 = vmatpush.msra.mxu0 0.0
    %273 = vmatpush.msra.mxu0 %v34
    %274 = vmatpush.msra.mxu0 %v33
    %275 = vmatpush.msra.mxu0 %v32
    %276 = vmatpush.msra.mxu0 %v31
    %277 = vmatmul.f32.gmra.mxu0 %v259
    %v278 = vpop.f32.mrf.mxu0
    %v279 = vadd.f32 0.0, %v278
    %280 = vdwg.mxu0
    %v281 = vadd.f32 %v108, %v279
    %v282 = vmul.f32 %v281, 0.5
    %v283 = vtanh.pop %v282
    %v284 = vadd.f32 %v283, 1.0
    %v285 = vmul.f32 %v284, 0.5
    %v286 = vtanh.pop %v281
    %v287 = vmul.f32 %v285, %v249
    %289 = vrot.lane.b32.xlu0 %v286, 64
    %v290 = vpop.permute.xlu0 %289
    %v292 = vmul.f32 %v285, %v290
    %294 = vrot.lane.b32.xlu0 %v292, 32
    %v295 = vpop.permute.xlu0 %294
    %v297 = vadd.f32 %v287, %v295
    %v298 = vtanh.pop %v297
    %300 = vrot.lane.b32.xlu0 %v298, 64
    %v301 = vpop.permute.xlu0 %300
    %v303 = vmul.f32 %v285, %v301
    %305 = vrot.lane.b32.xlu0 %v303, 32
    %v306 = vpop.permute.xlu0 %305
    %v307 = vsel %vm113, %v306, 0
    %309 = vmatpush.msra.mxu0 0.0
    %310 = vmatpush.msra.mxu0 0.0
    %311 = vmatpush.msra.mxu0 0.0
    %312 = vmatpush.msra.mxu0 0.0
    %313 = vmatpush.msra.mxu0 0.0
    %314 = vmatpush.msra.mxu0 0.0
    %315 = vmatpush.msra.mxu0 0.0
    %316 = vmatpush.msra.mxu0 0.0
    %317 = vmatpush.msra.mxu0 0.0
    %318 = vmatpush.msra.mxu0 0.0
    %319 = vmatpush.msra.mxu0 0.0
    %320 = vmatpush.msra.mxu0 0.0
    %321 = vmatpush.msra.mxu0 %v34
    %322 = vmatpush.msra.mxu0 %v33
    %323 = vmatpush.msra.mxu0 %v32
    %324 = vmatpush.msra.mxu0 %v31
    %325 = vmatmul.f32.gmra.mxu0 %v307
    %v326 = vpop.f32.mrf.mxu0
    %v327 = vadd.f32 0.0, %v326
    %328 = vdwg.mxu0
    %v329 = vadd.f32 %v109, %v327
    %v330 = vmul.f32 %v329, 0.5
    %v331 = vtanh.pop %v330
    %v332 = vadd.f32 %v331, 1.0
    %v333 = vmul.f32 %v332, 0.5
    %v334 = vtanh.pop %v329
    %v335 = vmul.f32 %v333, %v297
    %337 = vrot.lane.b32.xlu0 %v334, 64
    %v338 = vpop.permute.xlu0 %337
    %v340 = vmul.f32 %v333, %v338
    %342 = vrot.lane.b32.xlu0 %v340, 32
    %v343 = vpop.permute.xlu0 %342
    %v345 = vadd.f32 %v335, %v343
    %v346 = vtanh.pop %v345
    %348 = vrot.lane.b32.xlu0 %v346, 64
    %v349 = vpop.permute.xlu0 %348
    %v351 = vmul.f32 %v333, %v349
    %353 = vrot.lane.b32.xlu0 %v351, 32
    %v354 = vpop.permute.xlu0 %353
    %v355 = vsel %vm113, %v354, 0
    %357 = vmatpush.msra.mxu0 0.0
    %358 = vmatpush.msra.mxu0 0.0
    %359 = vmatpush.msra.mxu0 0.0
    %360 = vmatpush.msra.mxu0 0.0
    %361 = vmatpush.msra.mxu0 0.0
    %362 = vmatpush.msra.mxu0 0.0
    %363 = vmatpush.msra.mxu0 0.0
    %364 = vmatpush.msra.mxu0 0.0
    %365 = vmatpush.msra.mxu0 0.0
    %366 = vmatpush.msra.mxu0 0.0
    %367 = vmatpush.msra.mxu0 0.0
    %368 = vmatpush.msra.mxu0 0.0
    %369 = vmatpush.msra.mxu0 %v34
    %370 = vmatpush.msra.mxu0 %v33
    %371 = vmatpush.msra.mxu0 %v32
    %372 = vmatpush.msra.mxu0 %v31
    %373 = vmatmul.f32.gmra.mxu0 %v355
    %v374 = vpop.f32.mrf.mxu0
    %v375 = vadd.f32 0.0, %v374
    %376 = vdwg.mxu0
    %v377 = vadd.f32 %v110, %v375
    %v378 = vmul.f32 %v377, 0.5
    %v379 = vtanh.pop %v378
    %v380 = vadd.f32 %v379, 1.0
    %v381 = vmul.f32 %v380, 0.5
    %v382 = vtanh.pop %v377
    %v383 = vmul.f32 %v381, %v345
    %385 = vrot.lane.b32.xlu0 %v382, 64
    %v386 = vpop.permute.xlu0 %385
    %v388 = vmul.f32 %v381, %v386
    %390 = vrot.lane.b32.xlu0 %v388, 32
    %v391 = vpop.permute.xlu0 %390
    %v393 = vadd.f32 %v383, %v391
    %v394 = vtanh.pop %v393
    %396 = vrot.lane.b32.xlu0 %v394, 64
    %v397 = vpop.permute.xlu0 %396
    %v399 = vmul.f32 %v381, %v397
    %401 = vrot.lane.b32.xlu0 %v399, 32
    %v402 = vpop.permute.xlu0 %401
    %v403 = vsel %vm113, %v402, 0
    %405 = vmatpush.msra.mxu0 0.0
    %406 = vmatpush.msra.mxu0 0.0
    %407 = vmatpush.msra.mxu0 0.0
    %408 = vmatpush.msra.mxu0 0.0
    %409 = vmatpush.msra.mxu0 0.0
    %410 = vmatpush.msra.mxu0 0.0
    %411 = vmatpush.msra.mxu0 0.0
    %412 = vmatpush.msra.mxu0 0.0
    %413 = vmatpush.msra.mxu0 0.0
    %414 = vmatpush.msra.mxu0 0.0
    %415 = vmatpush.msra.mxu0 0.0
    %416 = vmatpush.msra.mxu0 0.0
    %417 = vmatpush.msra.mxu0 %v34
    %418 = vmatpush.msra.mxu0 %v33
    %419 = vmatpush.msra.mxu0 %v32
    %420 = vmatpush.msra.mxu0 %v31
    %421 = vmatmul.f32.gmra.mxu0 %v403
    %v422 = vpop.f32.mrf.mxu0
    %v423 = vadd.f32 0.0, %v422
    %424 = vdwg.mxu0
    %v425 = vadd.f32 %v111, %v423
    %v426 = vmul.f32 %v425, 0.5
    %v427 = vtanh.pop %v426
    %v428 = vadd.f32 %v427, 1.0
    %v429 = vmul.f32 %v428, 0.5
    %v430 = vtanh.pop %v425
    %v431 = vmul.f32 %v429, %v393
    %433 = vrot.lane.b32.xlu0 %v430, 64
    %v434 = vpop.permute.xlu0 %433
    %v436 = vmul.f32 %v429, %v434
    %438 = vrot.lane.b32.xlu0 %v436, 32
    %v439 = vpop.permute.xlu0 %438
    %v441 = vadd.f32 %v431, %v439
    %v442 = vtanh.pop %v441
    %444 = vrot.lane.b32.xlu0 %v442, 64
    %v445 = vpop.permute.xlu0 %444
    %v447 = vmul.f32 %v429, %v445
    %449 = vrot.lane.b32.xlu0 %v447, 32
    %v450 = vpop.permute.xlu0 %449
    %v451 = vsel %vm113, %v450, 0
    %453 = vmatpush.msra.mxu0 0.0
    %454 = vmatpush.msra.mxu0 0.0
    %455 = vmatpush.msra.mxu0 0.0
    %456 = vmatpush.msra.mxu0 0.0
    %457 = vmatpush.msra.mxu0 0.0
    %458 = vmatpush.msra.mxu0 0.0
    %459 = vmatpush.msra.mxu0 0.0
    %460 = vmatpush.msra.mxu0 0.0
    %461 = vmatpush.msra.mxu0 0.0
    %462 = vmatpush.msra.mxu0 0.0
    %463 = vmatpush.msra.mxu0 0.0
    %464 = vmatpush.msra.mxu0 0.0
    %465 = vmatpush.msra.mxu0 %v34
    %466 = vmatpush.msra.mxu0 %v33
    %467 = vmatpush.msra.mxu0 %v32
    %468 = vmatpush.msra.mxu0 %v31
    %469 = vmatmul.f32.gmra.mxu0 %v451
    %v470 = vpop.f32.mrf.mxu0
    %v471 = vadd.f32 0.0, %v470
    %472 = vdwg.mxu0
    %v473 = vadd.f32 %v112, %v471
    %v474 = vmul.f32 %v473, 0.5
    %v475 = vtanh.pop %v474
    %v476 = vadd.f32 %v475, 1.0
    %v477 = vmul.f32 %v476, 0.5
    %v478 = vtanh.pop %v473
    %v479 = vmul.f32 %v477, %v441
    %481 = vrot.lane.b32.xlu0 %v478, 64
    %v482 = vpop.permute.xlu0 %481
    %v484 = vmul.f32 %v477, %v482
    %486 = vrot.lane.b32.xlu0 %v484, 32
    %v487 = vpop.permute.xlu0 %486
    %v489 = vadd.f32 %v479, %v487
    %v490 = vtanh.pop %v489
    %492 = vrot.lane.b32.xlu0 %v490, 64
    %v493 = vpop.permute.xlu0 %492
    %v495 = vmul.f32 %v477, %v493
    %v496 = vperm.slane %v37, 0
    %498 = vrot.lane.b32.xlu0 %v496, 96
    %v499 = vpop.permute.xlu0 %498
    %v501 = vmul.f32 %v159, %v499
    %v502 = vmul.f32 %v207, %v499
    %v503 = vmul.f32 %v255, %v499
    %v504 = vmul.f32 %v303, %v499
    %v505 = vmul.f32 %v351, %v499
    %v506 = vmul.f32 %v399, %v499
    %v507 = vmul.f32 %v447, %v499
    %v508 = vmul.f32 %v495, %v499
    %517 = vrot.lane.b32.xlu0 %v501, 32
    %v518 = vpop.permute.xlu0 %517
    %519 = vrot.lane.b32.xlu0 %v502, 32
    %v520 = vpop.permute.xlu0 %519
    %521 = vrot.lane.b32.xlu0 %v503, 32
    %v522 = vpop.permute.xlu0 %521
    %523 = vrot.lane.b32.xlu0 %v504, 32
    %v524 = vpop.permute.xlu0 %523
    %525 = vrot.lane.b32.xlu0 %v505, 32
    %v526 = vpop.permute.xlu0 %525
    %527 = vrot.lane.b32.xlu0 %v506, 32
    %v528 = vpop.permute.xlu0 %527
    %529 = vrot.lane.b32.xlu0 %v507, 32
    %v530 = vpop.permute.xlu0 %529
    %531 = vrot.lane.b32.xlu0 %v508, 32
    %v532 = vpop.permute.xlu0 %531
    %vm541 = vcmask 254976
    %v542 = vsel %vm541, %v518, 0.0
    %543 = vadd.xlane.f32.xlu0 %v542
    %v544 = vpop.xlane.xlu0 %543
    %v545 = vsel %vm541, %v520, 0.0
    %546 = vadd.xlane.f32.xlu0 %v545
    %v547 = vpop.xlane.xlu0 %546
    %v548 = vsel %vm541, %v522, 0.0
    %549 = vadd.xlane.f32.xlu0 %v548
    %v550 = vpop.xlane.xlu0 %549
    %v551 = vsel %vm541, %v524, 0.0
    %552 = vadd.xlane.f32.xlu0 %v551
    %v553 = vpop.xlane.xlu0 %552
    %v554 = vsel %vm541, %v526, 0.0
    %555 = vadd.xlane.f32.xlu0 %v554
    %v556 = vpop.xlane.xlu0 %555
    %v557 = vsel %vm541, %v528, 0.0
    %558 = vadd.xlane.f32.xlu0 %v557
    %v559 = vpop.xlane.xlu0 %558
    %v560 = vsel %vm541, %v530, 0.0
    %561 = vadd.xlane.f32.xlu0 %v560
    %v562 = vpop.xlane.xlu0 %561
    %v563 = vsel %vm541, %v532, 0.0
    %564 = vadd.xlane.f32.xlu0 %v563
    %v565 = vpop.xlane.xlu0 %564
    %s567 = vtos %v38
    %v568 = vstv %s567
    %v570 = vadd.f32 %v544, %v568
    %v571 = vadd.f32 %v547, %v568
    %v572 = vadd.f32 %v550, %v568
    %v573 = vadd.f32 %v553, %v568
    %v574 = vadd.f32 %v556, %v568
    %v575 = vadd.f32 %v559, %v568
    %v576 = vadd.f32 %v562, %v568
    %v577 = vadd.f32 %v565, %v568
    %v579 = vperm.slane %v30, 0
    %v580 = vlaneseq
    %v581 = vshrl.u32 %v580, 7
    %583 = vset.pattern.permute.xlu0 %v581
    %584 = vperm.xlu0 %583, %v579
    %v585 = vpop.permute.xlu0 %584
    %v586 = vperm.slane %v30, 1
    %v587 = vlaneseq
    %v588 = vshrl.u32 %v587, 7
    %590 = vset.pattern.permute.xlu0 %v588
    %591 = vperm.xlu0 %590, %v586
    %v592 = vpop.permute.xlu0 %591
    %v593 = vperm.slane %v30, 2
    %v594 = vlaneseq
    %v595 = vshrl.u32 %v594, 7
    %597 = vset.pattern.permute.xlu0 %v595
    %598 = vperm.xlu0 %597, %v593
    %v599 = vpop.permute.xlu0 %598
    %v600 = vperm.slane %v30, 3
    %v601 = vlaneseq
    %v602 = vshrl.u32 %v601, 7
    %604 = vset.pattern.permute.xlu0 %v602
    %605 = vperm.xlu0 %604, %v600
    %v606 = vpop.permute.xlu0 %605
    %v607 = vperm.slane %v30, 4
    %v608 = vlaneseq
    %v609 = vshrl.u32 %v608, 7
    %611 = vset.pattern.permute.xlu0 %v609
    %612 = vperm.xlu0 %611, %v607
    %v613 = vpop.permute.xlu0 %612
    %v614 = vperm.slane %v30, 5
    %v615 = vlaneseq
    %v616 = vshrl.u32 %v615, 7
    %618 = vset.pattern.permute.xlu0 %v616
    %619 = vperm.xlu0 %618, %v614
    %v620 = vpop.permute.xlu0 %619
    %v621 = vperm.slane %v30, 6
    %v622 = vlaneseq
    %v623 = vshrl.u32 %v622, 7
    %625 = vset.pattern.permute.xlu0 %v623
    %626 = vperm.xlu0 %625, %v621
    %v627 = vpop.permute.xlu0 %626
    %v628 = vperm.slane %v30, 7
    %v629 = vlaneseq
    %v630 = vshrl.u32 %v629, 7
    %632 = vset.pattern.permute.xlu0 %v630
    %633 = vperm.xlu0 %632, %v628
    %v634 = vpop.permute.xlu0 %633
    %v643 = vadd.f32 %v570, %v585
    %v644 = vadd.f32 %v571, %v592
    %v645 = vadd.f32 %v572, %v599
    %v646 = vadd.f32 %v573, %v606
    %v647 = vadd.f32 %v574, %v613
    %v648 = vadd.f32 %v575, %v620
    %v649 = vadd.f32 %v576, %v627
    %v650 = vadd.f32 %v577, %v634
    %659 = vset.pattern.permute.xlu0 0
    %660 = vperm.xlu0 %659, %v643
    %v661 = vpop.permute.xlu0 %660
    %662 = vset.pattern.permute.xlu0 0
    %663 = vperm.xlu0 %662, %v644
    %v664 = vpop.permute.xlu0 %663
    %665 = vset.pattern.permute.xlu0 0
    %666 = vperm.xlu0 %665, %v645
    %v667 = vpop.permute.xlu0 %666
    %668 = vset.pattern.permute.xlu0 0
    %669 = vperm.xlu0 %668, %v646
    %v670 = vpop.permute.xlu0 %669
    %671 = vset.pattern.permute.xlu0 0
    %672 = vperm.xlu0 %671, %v647
    %v673 = vpop.permute.xlu0 %672
    %674 = vset.pattern.permute.xlu0 0
    %675 = vperm.xlu0 %674, %v648
    %v676 = vpop.permute.xlu0 %675
    %677 = vset.pattern.permute.xlu0 0
    %678 = vperm.xlu0 %677, %v649
    %v679 = vpop.permute.xlu0 %678
    %680 = vset.pattern.permute.xlu0 0
    %681 = vperm.xlu0 %680, %v650
    %v682 = vpop.permute.xlu0 %681
    %v683 = vlaneseq
    %v684 = vand.u32 %v683, 127
    %v685 = vperm.slane %v661, %v684
    %v686 = vperm.slane %v664, %v684
    %v687 = vperm.slane %v667, %v684
    %v688 = vperm.slane %v670, %v684
    %v689 = vperm.slane %v673, %v684
    %v690 = vperm.slane %v676, %v684
    %v691 = vperm.slane %v679, %v684
    %v692 = vperm.slane %v682, %v684
    %vm693 = vcmask 1041409
    %v694 = vsel %vm693, %v686, %v685
    %vm695 = vcmask 1042434
    %v696 = vsel %vm695, %v687, %v694
    %vm697 = vcmask 1043459
    %v698 = vsel %vm697, %v688, %v696
    %vm699 = vcmask 1044484
    %v700 = vsel %vm699, %v689, %v698
    %vm701 = vcmask 1045509
    %v702 = vsel %vm701, %v690, %v700
    %vm703 = vcmask 1046534
    %v704 = vsel %vm703, %v691, %v702
    %vm705 = vcmask 1047559
    %v706 = vsel %vm705, %v692, %v704
    %vm708 = vcmask 15360
    %709 = vst.msk [vmem:[%s3] sm:$0xff] %vm708, %v706
    // Predicated region
    $region18: #{tpu_custom_call.1} parent=1 // pred_check
      _
    $region19: #{tpu_custom_call.1} parent=1 // pred_check_branch
      %711 = sbr.rel (0) target = $region21
    $region20: #{tpu_custom_call.1} parent=1 // pred_region
      _
    $region21: #{tpu_custom_call.1} parent=1 // pred_fallthru
      _
    // Predicated region
    $region22: #{tpu_custom_call.1} parent=1 // pred_check
      _
    $region23: #{tpu_custom_call.1} parent=1 // pred_check_branch
      %713 = sbr.rel (0) target = $region25
    $region24: #{tpu_custom_call.1} parent=1 // pred_region
      _
    $region25: #{tpu_custom_call.1} parent=1 // pred_fallthru
      _
    %714 = vsyncpa [#allocation3], 1

</llo_original>
